<compile_context>
chip_gen: v6e
topology: v6e:2x2x1
jax: 0.10.0
libtpu: 0.0.40
codegen_flags: <defaults>
</compile_context>

<pallas_src>
import jax
import jax.numpy as jnp
from jax import lax
from jax.experimental import pallas as pl
from jax.experimental.pallas import tpu as pltpu
import numpy as np

HIDDEN = 32
INPUT = 1
LANE_BLOCK = 128  # batch elements per grid block (batch lives on lanes)


def rnn_fused_kernel(x_ref, h0_ref, whh_ref, wih_ref, bias_ref, wout_ref,
                     y_ref, hN_ref):
    """Fused input-proj + tanh recurrence + output-proj, batch-on-lanes.

    x_ref:    (S, Bb)   raw input, time-major, batch on lanes
    h0_ref:   (32, Bb)  initial hidden state (hidden on sublanes)
    whh_ref:  (32, 32)  W_hh
    wih_ref:  (32, 1)   W_ih (input_size == 1)
    bias_ref: (32, 1)   b_ih + b_hh
    wout_ref: (32, 1)   W_out^T of Linear(32, 1)
    y_ref:    (S, Bb)   per-step Linear output (output bias added in wrapper)
    hN_ref:   (32, Bb)  final hidden state (aliased with h0)
    """
    S = x_ref.shape[0]

    # Hoist all weight loads out of the (unrolled) time loop.
    whh = whh_ref[...]
    wih = wih_ref[...]
    bias = bias_ref[...]
    wout = wout_ref[...]

    def step(t, h):
        x_t = x_ref[pl.ds(t, 1), :]                          # (1, Bb)
        pre = wih * x_t + bias                               # VPU: (32, Bb)
        pre = pre + jnp.dot(whh, h, preferred_element_type=jnp.float32)  # MXU
        h_new = jnp.tanh(pre)                                # EUP
        # Fused Linear(32, 1): VPU mul + sublane reduce, lane-dense store.
        y_ref[pl.ds(t, 1), :] = jnp.sum(wout * h_new, axis=0, keepdims=True)
        return h_new

    # Small static S -> full unroll; cap the unroll for long sequences.
    unroll = True if S <= 32 else 8
    hN_ref[...] = lax.fori_loop(0, S, step, h0_ref[...], unroll=unroll)


def rnn_forward(x, h_state, params):
    """x: (B, S, 1) batch_first like PyTorch.  h_state: None or (1, B, 32).
    Returns (outs, h_state) with outs: (B*S, 1), h_state: (1, B, 32)."""
    B, S, _ = x.shape
    Bp = ((B + LANE_BLOCK - 1) // LANE_BLOCK) * LANE_BLOCK
    nb = Bp // LANE_BLOCK

    # Raw input, time-major, batch on lanes: (S, Bp). Padded lanes are dead
    # (per-lane independent recurrence) and are sliced off at the end.
    x_tm = jnp.transpose(x[:, :, 0].astype(jnp.float32))          # (S, B)
    if Bp != B:
        x_tm = jnp.pad(x_tm, ((0, 0), (0, Bp - B)))

    if h_state is None:
        h0 = jnp.zeros((HIDDEN, Bp), jnp.float32)
    else:
        h0 = jnp.transpose(h_state[0].astype(jnp.float32))        # (32, B)
        if Bp != B:
            h0 = jnp.pad(h0, ((0, 0), (0, Bp - B)))

    whh = params["w_hh"].astype(jnp.float32)                          # (32, 32)
    wih = params["w_ih"].astype(jnp.float32).reshape(HIDDEN, 1)       # (32, 1)
    bias = (params["b_ih"] + params["b_hh"]).astype(jnp.float32).reshape(HIDDEN, 1)
    wout = params["w_out"].astype(jnp.float32).reshape(HIDDEN, 1)     # (32, 1)

    batched = lambda i: (0, i)
    const = lambda i: (0, 0)

    # TODO(synk): for very long S, add a time-chunk grid axis ("arbitrary") so
    # the x / y blocks stay bounded on v7x's 64 MiB VMEM.
    y_tm, hNp = pl.pallas_call(
        rnn_fused_kernel,
        out_shape=(
            jax.ShapeDtypeStruct((S, Bp), jnp.float32),
            jax.ShapeDtypeStruct((HIDDEN, Bp), jnp.float32),
        ),
        grid=(nb,),
        in_specs=[
            pl.BlockSpec((S, LANE_BLOCK), batched),       # x
            pl.BlockSpec((HIDDEN, LANE_BLOCK), batched),  # h0
            pl.BlockSpec((HIDDEN, HIDDEN), const),        # W_hh
            pl.BlockSpec((HIDDEN, 1), const),             # W_ih
            pl.BlockSpec((HIDDEN, 1), const),             # fused bias
            pl.BlockSpec((HIDDEN, 1), const),             # W_out^T
        ],
        out_specs=(
            pl.BlockSpec((S, LANE_BLOCK), batched),       # y
            pl.BlockSpec((HIDDEN, LANE_BLOCK), batched),  # hN
        ),
        input_output_aliases={1: 1},  # reuse the h0 buffer for hN
        compiler_params=pltpu.CompilerParams(
            dimension_semantics=("parallel",)),
    )(x_tm, h0, whh, wih, bias, wout)

    # Reorder to PyTorch's batch_first view(-1, 32) ordering and add out bias.
    outs = jnp.transpose(y_tm[:, :B]).reshape(B * S, 1) + params["b_out"]
    hN = jnp.transpose(hNp[:, :B])[None]                              # (1, B, 32)
    return outs, hN


def init_params(key):
    """Deterministic init mirroring PyTorch's uniform(-1/sqrt(H), 1/sqrt(H))."""
    k = 1.0 / np.sqrt(HIDDEN)
    keys = jax.random.split(key, 6)
    return {
        "w_ih": jax.random.uniform(keys[0], (HIDDEN, INPUT), jnp.float32, -k, k),
        "w_hh": jax.random.uniform(keys[1], (HIDDEN, HIDDEN), jnp.float32, -k, k),
        "b_ih": jax.random.uniform(keys[2], (HIDDEN,), jnp.float32, -k, k),
        "b_hh": jax.random.uniform(keys[3], (HIDDEN,), jnp.float32, -k, k),
        "w_out": jax.random.uniform(keys[4], (1, HIDDEN), jnp.float32, -k, k),
        "b_out": jax.random.uniform(keys[5], (1,), jnp.float32, -k, k),
    }


def rnn_forward_ref(x, h_state, params):
    """Pure-JAX reference (matches PyTorch nn.RNN + Linear semantics)."""
    B, S, _ = x.shape
    h0 = jnp.zeros((B, HIDDEN), jnp.float32) if h_state is None else h_state[0]

    def step(h, x_t):
        pre = (x_t @ params["w_ih"].T + params["b_ih"]
               + h @ params["w_hh"].T + params["b_hh"])
        h_new = jnp.tanh(pre)
        return h_new, h_new

    xs = jnp.transpose(x, (1, 0, 2))                                  # (S, B, 1)
    hN, r_out_tm = lax.scan(step, h0, xs)
    r_out = jnp.transpose(r_out_tm, (1, 0, 2)).reshape(-1, HIDDEN)
    outs = r_out @ params["w_out"].T + params["b_out"]
    return outs, hN[None]


if __name__ == "__main__":
    key = jax.random.PRNGKey(0)
    pkey, xkey = jax.random.split(key)
    params = init_params(pkey)

    B, S = 2, 8
    x = jax.random.normal(xkey, (B, S, 1), jnp.float32)
    h_state = None

    outs, h_new = rnn_forward(x, h_state, params)
    jax.block_until_ready((outs, h_new))

    outs_ref, h_ref = rnn_forward_ref(x, h_state, params)
    np.testing.assert_allclose(np.asarray(outs), np.asarray(outs_ref),
                               rtol=1e-5, atol=1e-5)
    np.testing.assert_allclose(np.asarray(h_new), np.asarray(h_ref),
                               rtol=1e-5, atol=1e-5)

    assert outs.shape == (B * S, 1)
    assert h_new.shape == (1, B, HIDDEN)
    print("KERNEL_OK")
</pallas_src>

<mosaic_0001>
module attributes {stable_mosaic.version = 11 : i64} {
  func.func @rnn_fused_kernel(%arg0: i32, %arg1: memref<8x128xf32, #tpu.memory_space<vmem>>, %arg2: memref<32x128xf32, #tpu.memory_space<vmem>>, %arg3: memref<32x32xf32, #tpu.memory_space<vmem>>, %arg4: memref<32x1xf32, #tpu.memory_space<vmem>>, %arg5: memref<32x1xf32, #tpu.memory_space<vmem>>, %arg6: memref<32x1xf32, #tpu.memory_space<vmem>>, %arg7: memref<8x128xf32, #tpu.memory_space<vmem>>, %arg8: memref<32x128xf32, #tpu.memory_space<vmem>>) attributes {dimension_semantics = [#tpu.dimension_semantics<parallel>], iteration_bounds = array<i64: 1>, scalar_prefetch = 0 : i64, scratch_operands = 0 : i64, tpu.core_type = #tpu.core_type<tc>, window_params = [{transform_indices = @transform_0, window_bounds = array<i64: 8, 128>}, {transform_indices = @transform_1, window_bounds = array<i64: 32, 128>}, {pipeline_mode = #tpu.pipeline_mode<synchronous>, transform_indices = @transform_2, window_bounds = array<i64: 32, 32>}, {pipeline_mode = #tpu.pipeline_mode<synchronous>, transform_indices = @transform_3, window_bounds = array<i64: 32, 1>}, {pipeline_mode = #tpu.pipeline_mode<synchronous>, transform_indices = @transform_4, window_bounds = array<i64: 32, 1>}, {pipeline_mode = #tpu.pipeline_mode<synchronous>, transform_indices = @transform_5, window_bounds = array<i64: 32, 1>}, {transform_indices = @transform_6, window_bounds = array<i64: 8, 128>}, {transform_indices = @transform_7, window_bounds = array<i64: 32, 128>}]} {
    %c0 = arith.constant 0 : index
    %c0_0 = arith.constant 0 : index
    %0 = vector.load %arg3[%c0, %c0_0] : memref<32x32xf32, #tpu.memory_space<vmem>>, vector<32x32xf32>
    %c0_1 = arith.constant 0 : index
    %c0_2 = arith.constant 0 : index
    %1 = vector.load %arg4[%c0_1, %c0_2] : memref<32x1xf32, #tpu.memory_space<vmem>>, vector<32x1xf32>
    %c0_3 = arith.constant 0 : index
    %c0_4 = arith.constant 0 : index
    %2 = vector.load %arg5[%c0_3, %c0_4] : memref<32x1xf32, #tpu.memory_space<vmem>>, vector<32x1xf32>
    %c0_5 = arith.constant 0 : index
    %c0_6 = arith.constant 0 : index
    %3 = vector.load %arg6[%c0_5, %c0_6] : memref<32x1xf32, #tpu.memory_space<vmem>>, vector<32x1xf32>
    %c0_7 = arith.constant 0 : index
    %c0_8 = arith.constant 0 : index
    %4 = vector.load %arg2[%c0_7, %c0_8] : memref<32x128xf32, #tpu.memory_space<vmem>>, vector<32x128xf32>
    %c0_i32 = arith.constant 0 : i32
    %5 = arith.index_cast %c0_i32 : i32 to index
    %c0_9 = arith.constant 0 : index
    %6 = vector.load %arg1[%5, %c0_9] : memref<8x128xf32, #tpu.memory_space<vmem>>, vector<1x128xf32>
    %7 = vector.broadcast %1 : vector<32x1xf32> to vector<32x128xf32>
    %8 = vector.broadcast %6 : vector<1x128xf32> to vector<32x128xf32>
    %9 = arith.mulf %7, %8 : vector<32x128xf32>
    %10 = vector.broadcast %2 : vector<32x1xf32> to vector<32x128xf32>
    %11 = arith.addf %9, %10 : vector<32x128xf32>
    %cst = arith.constant dense<0.000000e+00> : vector<32x128xf32>
    %12 = tpu.matmul %0, %4, %cst {dimension_numbers = #tpu.dot_dimension_numbers<[1], [0], [0], [1], [0, 0, 1, 1], [], []>} : vector<32x32xf32>, vector<32x128xf32>, vector<32x128xf32> -> vector<32x128xf32>
    %13 = arith.addf %11, %12 : vector<32x128xf32>
    %14 = math.tanh %13 : vector<32x128xf32>
    %15 = vector.broadcast %3 : vector<32x1xf32> to vector<32x128xf32>
    %16 = arith.mulf %15, %14 : vector<32x128xf32>
    %cst_10 = arith.constant dense<0.000000e+00> : vector<128xf32>
    %17 = vector.multi_reduction <add>, %16, %cst_10 [0] : vector<32x128xf32> to vector<128xf32>
    %18 = vector.shape_cast %17 : vector<128xf32> to vector<1x128xf32>
    %19 = arith.index_cast %c0_i32 : i32 to index
    %c0_11 = arith.constant 0 : index
    %20 = vector.load %arg7[%19, %c0_11] : memref<8x128xf32, #tpu.memory_space<vmem>>, vector<1x128xf32>
    tpu.vector_store %arg7[%19, %c0_11], %18 {strides = array<i32>} : memref<8x128xf32, #tpu.memory_space<vmem>>, vector<1x128xf32>,
    %c1_i32 = arith.constant 1 : i32
    %21 = arith.index_cast %c1_i32 : i32 to index
    %c0_12 = arith.constant 0 : index
    %22 = vector.load %arg1[%21, %c0_12] : memref<8x128xf32, #tpu.memory_space<vmem>>, vector<1x128xf32>
    %23 = vector.broadcast %1 : vector<32x1xf32> to vector<32x128xf32>
    %24 = vector.broadcast %22 : vector<1x128xf32> to vector<32x128xf32>
    %25 = arith.mulf %23, %24 : vector<32x128xf32>
    %26 = vector.broadcast %2 : vector<32x1xf32> to vector<32x128xf32>
    %27 = arith.addf %25, %26 : vector<32x128xf32>
    %cst_13 = arith.constant dense<0.000000e+00> : vector<32x128xf32>
    %28 = tpu.matmul %0, %14, %cst_13 {dimension_numbers = #tpu.dot_dimension_numbers<[1], [0], [0], [1], [0, 0, 1, 1], [], []>} : vector<32x32xf32>, vector<32x128xf32>, vector<32x128xf32> -> vector<32x128xf32>
    %29 = arith.addf %27, %28 : vector<32x128xf32>
    %30 = math.tanh %29 : vector<32x128xf32>
    %31 = vector.broadcast %3 : vector<32x1xf32> to vector<32x128xf32>
    %32 = arith.mulf %31, %30 : vector<32x128xf32>
    %cst_14 = arith.constant dense<0.000000e+00> : vector<128xf32>
    %33 = vector.multi_reduction <add>, %32, %cst_14 [0] : vector<32x128xf32> to vector<128xf32>
    %34 = vector.shape_cast %33 : vector<128xf32> to vector<1x128xf32>
    %35 = arith.index_cast %c1_i32 : i32 to index
    %c0_15 = arith.constant 0 : index
    %36 = vector.load %arg7[%35, %c0_15] : memref<8x128xf32, #tpu.memory_space<vmem>>, vector<1x128xf32>
    tpu.vector_store %arg7[%35, %c0_15], %34 {strides = array<i32>} : memref<8x128xf32, #tpu.memory_space<vmem>>, vector<1x128xf32>,
    %c2_i32 = arith.constant 2 : i32
    %37 = arith.index_cast %c2_i32 : i32 to index
    %c0_16 = arith.constant 0 : index
    %38 = vector.load %arg1[%37, %c0_16] : memref<8x128xf32, #tpu.memory_space<vmem>>, vector<1x128xf32>
    %39 = vector.broadcast %1 : vector<32x1xf32> to vector<32x128xf32>
    %40 = vector.broadcast %38 : vector<1x128xf32> to vector<32x128xf32>
    %41 = arith.mulf %39, %40 : vector<32x128xf32>
    %42 = vector.broadcast %2 : vector<32x1xf32> to vector<32x128xf32>
    %43 = arith.addf %41, %42 : vector<32x128xf32>
    %cst_17 = arith.constant dense<0.000000e+00> : vector<32x128xf32>
    %44 = tpu.matmul %0, %30, %cst_17 {dimension_numbers = #tpu.dot_dimension_numbers<[1], [0], [0], [1], [0, 0, 1, 1], [], []>} : vector<32x32xf32>, vector<32x128xf32>, vector<32x128xf32> -> vector<32x128xf32>
    %45 = arith.addf %43, %44 : vector<32x128xf32>
    %46 = math.tanh %45 : vector<32x128xf32>
    %47 = vector.broadcast %3 : vector<32x1xf32> to vector<32x128xf32>
    %48 = arith.mulf %47, %46 : vector<32x128xf32>
    %cst_18 = arith.constant dense<0.000000e+00> : vector<128xf32>
    %49 = vector.multi_reduction <add>, %48, %cst_18 [0] : vector<32x128xf32> to vector<128xf32>
    %50 = vector.shape_cast %49 : vector<128xf32> to vector<1x128xf32>
    %51 = arith.index_cast %c2_i32 : i32 to index
    %c0_19 = arith.constant 0 : index
    %52 = vector.load %arg7[%51, %c0_19] : memref<8x128xf32, #tpu.memory_space<vmem>>, vector<1x128xf32>
    tpu.vector_store %arg7[%51, %c0_19], %50 {strides = array<i32>} : memref<8x128xf32, #tpu.memory_space<vmem>>, vector<1x128xf32>,
    %c3_i32 = arith.constant 3 : i32
    %53 = arith.index_cast %c3_i32 : i32 to index
    %c0_20 = arith.constant 0 : index
    %54 = vector.load %arg1[%53, %c0_20] : memref<8x128xf32, #tpu.memory_space<vmem>>, vector<1x128xf32>
    %55 = vector.broadcast %1 : vector<32x1xf32> to vector<32x128xf32>
    %56 = vector.broadcast %54 : vector<1x128xf32> to vector<32x128xf32>
    %57 = arith.mulf %55, %56 : vector<32x128xf32>
    %58 = vector.broadcast %2 : vector<32x1xf32> to vector<32x128xf32>
    %59 = arith.addf %57, %58 : vector<32x128xf32>
    %cst_21 = arith.constant dense<0.000000e+00> : vector<32x128xf32>
    %60 = tpu.matmul %0, %46, %cst_21 {dimension_numbers = #tpu.dot_dimension_numbers<[1], [0], [0], [1], [0, 0, 1, 1], [], []>} : vector<32x32xf32>, vector<32x128xf32>, vector<32x128xf32> -> vector<32x128xf32>
    %61 = arith.addf %59, %60 : vector<32x128xf32>
    %62 = math.tanh %61 : vector<32x128xf32>
    %63 = vector.broadcast %3 : vector<32x1xf32> to vector<32x128xf32>
    %64 = arith.mulf %63, %62 : vector<32x128xf32>
    %cst_22 = arith.constant dense<0.000000e+00> : vector<128xf32>
    %65 = vector.multi_reduction <add>, %64, %cst_22 [0] : vector<32x128xf32> to vector<128xf32>
    %66 = vector.shape_cast %65 : vector<128xf32> to vector<1x128xf32>
    %67 = arith.index_cast %c3_i32 : i32 to index
    %c0_23 = arith.constant 0 : index
    %68 = vector.load %arg7[%67, %c0_23] : memref<8x128xf32, #tpu.memory_space<vmem>>, vector<1x128xf32>
    tpu.vector_store %arg7[%67, %c0_23], %66 {strides = array<i32>} : memref<8x128xf32, #tpu.memory_space<vmem>>, vector<1x128xf32>,
    %c4_i32 = arith.constant 4 : i32
    %69 = arith.index_cast %c4_i32 : i32 to index
    %c0_24 = arith.constant 0 : index
    %70 = vector.load %arg1[%69, %c0_24] : memref<8x128xf32, #tpu.memory_space<vmem>>, vector<1x128xf32>
    %71 = vector.broadcast %1 : vector<32x1xf32> to vector<32x128xf32>
    %72 = vector.broadcast %70 : vector<1x128xf32> to vector<32x128xf32>
    %73 = arith.mulf %71, %72 : vector<32x128xf32>
    %74 = vector.broadcast %2 : vector<32x1xf32> to vector<32x128xf32>
    %75 = arith.addf %73, %74 : vector<32x128xf32>
    %cst_25 = arith.constant dense<0.000000e+00> : vector<32x128xf32>
    %76 = tpu.matmul %0, %62, %cst_25 {dimension_numbers = #tpu.dot_dimension_numbers<[1], [0], [0], [1], [0, 0, 1, 1], [], []>} : vector<32x32xf32>, vector<32x128xf32>, vector<32x128xf32> -> vector<32x128xf32>
    %77 = arith.addf %75, %76 : vector<32x128xf32>
    %78 = math.tanh %77 : vector<32x128xf32>
    %79 = vector.broadcast %3 : vector<32x1xf32> to vector<32x128xf32>
    %80 = arith.mulf %79, %78 : vector<32x128xf32>
    %cst_26 = arith.constant dense<0.000000e+00> : vector<128xf32>
    %81 = vector.multi_reduction <add>, %80, %cst_26 [0] : vector<32x128xf32> to vector<128xf32>
    %82 = vector.shape_cast %81 : vector<128xf32> to vector<1x128xf32>
    %83 = arith.index_cast %c4_i32 : i32 to index
    %c0_27 = arith.constant 0 : index
    %84 = vector.load %arg7[%83, %c0_27] : memref<8x128xf32, #tpu.memory_space<vmem>>, vector<1x128xf32>
    tpu.vector_store %arg7[%83, %c0_27], %82 {strides = array<i32>} : memref<8x128xf32, #tpu.memory_space<vmem>>, vector<1x128xf32>,
    %c5_i32 = arith.constant 5 : i32
    %85 = arith.index_cast %c5_i32 : i32 to index
    %c0_28 = arith.constant 0 : index
    %86 = vector.load %arg1[%85, %c0_28] : memref<8x128xf32, #tpu.memory_space<vmem>>, vector<1x128xf32>
    %87 = vector.broadcast %1 : vector<32x1xf32> to vector<32x128xf32>
    %88 = vector.broadcast %86 : vector<1x128xf32> to vector<32x128xf32>
    %89 = arith.mulf %87, %88 : vector<32x128xf32>
    %90 = vector.broadcast %2 : vector<32x1xf32> to vector<32x128xf32>
    %91 = arith.addf %89, %90 : vector<32x128xf32>
    %cst_29 = arith.constant dense<0.000000e+00> : vector<32x128xf32>
    %92 = tpu.matmul %0, %78, %cst_29 {dimension_numbers = #tpu.dot_dimension_numbers<[1], [0], [0], [1], [0, 0, 1, 1], [], []>} : vector<32x32xf32>, vector<32x128xf32>, vector<32x128xf32> -> vector<32x128xf32>
    %93 = arith.addf %91, %92 : vector<32x128xf32>
    %94 = math.tanh %93 : vector<32x128xf32>
    %95 = vector.broadcast %3 : vector<32x1xf32> to vector<32x128xf32>
    %96 = arith.mulf %95, %94 : vector<32x128xf32>
    %cst_30 = arith.constant dense<0.000000e+00> : vector<128xf32>
    %97 = vector.multi_reduction <add>, %96, %cst_30 [0] : vector<32x128xf32> to vector<128xf32>
    %98 = vector.shape_cast %97 : vector<128xf32> to vector<1x128xf32>
    %99 = arith.index_cast %c5_i32 : i32 to index
    %c0_31 = arith.constant 0 : index
    %100 = vector.load %arg7[%99, %c0_31] : memref<8x128xf32, #tpu.memory_space<vmem>>, vector<1x128xf32>
    tpu.vector_store %arg7[%99, %c0_31], %98 {strides = array<i32>} : memref<8x128xf32, #tpu.memory_space<vmem>>, vector<1x128xf32>,
    %c6_i32 = arith.constant 6 : i32
    %101 = arith.index_cast %c6_i32 : i32 to index
    %c0_32 = arith.constant 0 : index
    %102 = vector.load %arg1[%101, %c0_32] : memref<8x128xf32, #tpu.memory_space<vmem>>, vector<1x128xf32>
    %103 = vector.broadcast %1 : vector<32x1xf32> to vector<32x128xf32>
    %104 = vector.broadcast %102 : vector<1x128xf32> to vector<32x128xf32>
    %105 = arith.mulf %103, %104 : vector<32x128xf32>
    %106 = vector.broadcast %2 : vector<32x1xf32> to vector<32x128xf32>
    %107 = arith.addf %105, %106 : vector<32x128xf32>
    %cst_33 = arith.constant dense<0.000000e+00> : vector<32x128xf32>
    %108 = tpu.matmul %0, %94, %cst_33 {dimension_numbers = #tpu.dot_dimension_numbers<[1], [0], [0], [1], [0, 0, 1, 1], [], []>} : vector<32x32xf32>, vector<32x128xf32>, vector<32x128xf32> -> vector<32x128xf32>
    %109 = arith.addf %107, %108 : vector<32x128xf32>
    %110 = math.tanh %109 : vector<32x128xf32>
    %111 = vector.broadcast %3 : vector<32x1xf32> to vector<32x128xf32>
    %112 = arith.mulf %111, %110 : vector<32x128xf32>
    %cst_34 = arith.constant dense<0.000000e+00> : vector<128xf32>
    %113 = vector.multi_reduction <add>, %112, %cst_34 [0] : vector<32x128xf32> to vector<128xf32>
    %114 = vector.shape_cast %113 : vector<128xf32> to vector<1x128xf32>
    %115 = arith.index_cast %c6_i32 : i32 to index
    %c0_35 = arith.constant 0 : index
    %116 = vector.load %arg7[%115, %c0_35] : memref<8x128xf32, #tpu.memory_space<vmem>>, vector<1x128xf32>
    tpu.vector_store %arg7[%115, %c0_35], %114 {strides = array<i32>} : memref<8x128xf32, #tpu.memory_space<vmem>>, vector<1x128xf32>,
    %c7_i32 = arith.constant 7 : i32
    %117 = arith.index_cast %c7_i32 : i32 to index
    %c0_36 = arith.constant 0 : index
    %118 = vector.load %arg1[%117, %c0_36] : memref<8x128xf32, #tpu.memory_space<vmem>>, vector<1x128xf32>
    %119 = vector.broadcast %1 : vector<32x1xf32> to vector<32x128xf32>
    %120 = vector.broadcast %118 : vector<1x128xf32> to vector<32x128xf32>
    %121 = arith.mulf %119, %120 : vector<32x128xf32>
    %122 = vector.broadcast %2 : vector<32x1xf32> to vector<32x128xf32>
    %123 = arith.addf %121, %122 : vector<32x128xf32>
    %cst_37 = arith.constant dense<0.000000e+00> : vector<32x128xf32>
    %124 = tpu.matmul %0, %110, %cst_37 {dimension_numbers = #tpu.dot_dimension_numbers<[1], [0], [0], [1], [0, 0, 1, 1], [], []>} : vector<32x32xf32>, vector<32x128xf32>, vector<32x128xf32> -> vector<32x128xf32>
    %125 = arith.addf %123, %124 : vector<32x128xf32>
    %126 = math.tanh %125 : vector<32x128xf32>
    %127 = vector.broadcast %3 : vector<32x1xf32> to vector<32x128xf32>
    %128 = arith.mulf %127, %126 : vector<32x128xf32>
    %cst_38 = arith.constant dense<0.000000e+00> : vector<128xf32>
    %129 = vector.multi_reduction <add>, %128, %cst_38 [0] : vector<32x128xf32> to vector<128xf32>
    %130 = vector.shape_cast %129 : vector<128xf32> to vector<1x128xf32>
    %131 = arith.index_cast %c7_i32 : i32 to index
    %c0_39 = arith.constant 0 : index
    %132 = vector.load %arg7[%131, %c0_39] : memref<8x128xf32, #tpu.memory_space<vmem>>, vector<1x128xf32>
    tpu.vector_store %arg7[%131, %c0_39], %130 {strides = array<i32>} : memref<8x128xf32, #tpu.memory_space<vmem>>, vector<1x128xf32>,
    %c8_i32 = arith.constant 8 : i32
    %c0_40 = arith.constant 0 : index
    %c0_41 = arith.constant 0 : index
    %133 = vector.load %arg8[%c0_40, %c0_41] : memref<32x128xf32, #tpu.memory_space<vmem>>, vector<32x128xf32>
    tpu.vector_store %arg8[%c0_40, %c0_41], %126 {strides = array<i32>} : memref<32x128xf32, #tpu.memory_space<vmem>>, vector<32x128xf32>,
    return
  }
  func.func @transform_0(%arg0: i32) -> (i32, i32) {
    %c0_i32 = arith.constant 0 : i32
    %c0_i32_0 = arith.constant 0 : i32
    return %c0_i32, %arg0 : i32, i32
  }
  func.func @transform_1(%arg0: i32) -> (i32, i32) {
    %c0_i32 = arith.constant 0 : i32
    %c0_i32_0 = arith.constant 0 : i32
    return %c0_i32, %arg0 : i32, i32
  }
  func.func @transform_2(%arg0: i32) -> (i32, i32) {
    %c0_i32 = arith.constant 0 : i32
    %c0_i32_0 = arith.constant 0 : i32
    %c0_i32_1 = arith.constant 0 : i32
    return %c0_i32, %c0_i32_0 : i32, i32
  }
  func.func @transform_3(%arg0: i32) -> (i32, i32) {
    %c0_i32 = arith.constant 0 : i32
    %c0_i32_0 = arith.constant 0 : i32
    %c0_i32_1 = arith.constant 0 : i32
    return %c0_i32, %c0_i32_0 : i32, i32
  }
  func.func @transform_4(%arg0: i32) -> (i32, i32) {
    %c0_i32 = arith.constant 0 : i32
    %c0_i32_0 = arith.constant 0 : i32
    %c0_i32_1 = arith.constant 0 : i32
    return %c0_i32, %c0_i32_0 : i32, i32
  }
  func.func @transform_5(%arg0: i32) -> (i32, i32) {
    %c0_i32 = arith.constant 0 : i32
    %c0_i32_0 = arith.constant 0 : i32
    %c0_i32_1 = arith.constant 0 : i32
    return %c0_i32, %c0_i32_0 : i32, i32
  }
  func.func @transform_6(%arg0: i32) -> (i32, i32) {
    %c0_i32 = arith.constant 0 : i32
    %c0_i32_0 = arith.constant 0 : i32
    return %c0_i32, %arg0 : i32, i32
  }
  func.func @transform_7(%arg0: i32) -> (i32, i32) {
    %c0_i32 = arith.constant 0 : i32
    %c0_i32_0 = arith.constant 0 : i32
    return %c0_i32, %arg0 : i32, i32
  }
}

</mosaic_0001>

<llo_original>
// kernel: tpu_custom_call.1
$region0: #{tpu_custom_call.1}
  #allocation0 [shape = 'u32[]', space=smem, size = 0x4, offset = 0x4, fixed_abs, tag = 'smem constant byte address 0x4 - core index']
  #allocation1 [shape = 'u32[144,128]{1,0:T(1,128)}', space=vmem, size = 0x12000, scoped, tag = 'internal scratch']
  %s0 = inlined_call_operand.vmem [shape: f32[8,128], index: 0, kind: input, shape index: {}]
  %s1 = inlined_call_operand.hbm [shape: f32[32,128], index: 1, kind: input, shape index: {}, may-alias: {1,7}]
  %s2 = inlined_call_operand.vmem [shape: f32[32,32], index: 2, kind: input, shape index: {}]
  %s3 = inlined_call_operand.vmem [shape: f32[32,1], index: 3, kind: input, shape index: {}]
  %s4 = inlined_call_operand.vmem [shape: f32[32,1], index: 4, kind: input, shape index: {}]
  %s5 = inlined_call_operand.vmem [shape: f32[32,1], index: 5, kind: input, shape index: {}]
  %s6 = inlined_call_operand.hbm [shape: f32[8,128], index: 6, kind: output, shape index: {0}]
  %s7 = inlined_call_operand.hbm [shape: f32[32,128], index: 7, kind: output, shape index: {1}, may-alias: {1,7}]
  %8 = xla_tuple %s6, %s7
  %s9 = sld [smem:[#allocation0]]
  $region46: #{tpu_custom_call.1} parent=0
    _
  %s11 = ssub.s32 1, %s9
  %s12 = scalar_select 0, %s11, %s9
  $region1: #{tpu_custom_call.1} parent=0
    #allocation2 [shape = 'u8[16384]{0}', space=vmem, size = 0x4000, scoped, tag = 'input window, operand 1, single buffered']
    #allocation3 [shape = 's32[1]{0}', space=sflag, size = 0x4, scoped, tag = 'scoped memory for tpu_custom_call.1']
    #allocation4 [shape = 's32[1]{0}', space=sflag, size = 0x4, scoped, tag = 'scoped memory for tpu_custom_call.1']
    #allocation5 [shape = 'u8[4096]{0}', space=vmem, size = 0x1000, scoped, tag = 'output window, operand 0, single buffered']
    #allocation6 [shape = 'u8[16384]{0}', space=vmem, size = 0x4000, scoped, tag = 'output window, operand 1, single buffered']
    #allocation7 [shape = 's32[1]{0}', space=sflag, size = 0x4, scoped, tag = 'scoped memory for tpu_custom_call.1']
    %13 = vsyncpa [#allocation3], 0
    %14 = vsyncpa [#allocation4], 0
    %15 = vsyncpa [#allocation7], 0
    // Predicated region
    $region2: #{tpu_custom_call.1} parent=1 // pred_check
      _
    $region3: #{tpu_custom_call.1} parent=1 // pred_check_branch
      %17 = sbr.rel (0) target = $region5
    $region4: #{tpu_custom_call.1} parent=1 // pred_region
      _
    $region5: #{tpu_custom_call.1} parent=1 // pred_fallthru
      _
    // Predicated region
    $region6: #{tpu_custom_call.1} parent=1 // pred_check
      _
    $region7: #{tpu_custom_call.1} parent=1 // pred_check_branch
      %19 = sbr.rel (0) target = $region9
    $region8: #{tpu_custom_call.1} parent=1 // pred_region
      %s21 = ssub.s32 512, 512
      %22 = vsyncadd [#allocation3], %s21
      %s23 = sshll.u32 [#allocation2], 4
      %s24 = int_to_ptr.vmem [resolvable:$true] %s23
      %29 = dma.hbm_to_vmem [thread:$0]  %s1, 512, %s24, [#allocation3], 128, 128, 8
    $region9: #{tpu_custom_call.1} parent=1 // pred_fallthru
      _
    // Predicated region
    $region10: #{tpu_custom_call.1} parent=1 // pred_check
      _
    $region11: #{tpu_custom_call.1} parent=1 // pred_check_branch
      %31 = sbr.rel (0) target = $region13
    $region12: #{tpu_custom_call.1} parent=1 // pred_region
      _
    $region13: #{tpu_custom_call.1} parent=1 // pred_fallthru
      _
    // Predicated region
    $region14: #{tpu_custom_call.1} parent=1 // pred_check
      _
    $region15: #{tpu_custom_call.1} parent=1 // pred_check_branch
      %33 = sbr.rel (0) target = $region17
    $region16: #{tpu_custom_call.1} parent=1 // pred_region
      _
    $region17: #{tpu_custom_call.1} parent=1 // pred_fallthru
      _
    // Predicated region
    $region18: #{tpu_custom_call.1} parent=1 // pred_check
      _
    $region19: #{tpu_custom_call.1} parent=1 // pred_check_branch
      %35 = sbr.rel (0) target = $region21
    $region20: #{tpu_custom_call.1} parent=1 // pred_region
      _
    $region21: #{tpu_custom_call.1} parent=1 // pred_fallthru
      _
    // Predicated region
    $region22: #{tpu_custom_call.1} parent=1 // pred_check
      _
    $region23: #{tpu_custom_call.1} parent=1 // pred_check_branch
      %37 = sbr.rel (0) target = $region25
    $region24: #{tpu_custom_call.1} parent=1 // pred_region
      _
    $region25: #{tpu_custom_call.1} parent=1 // pred_fallthru
      _
    // Predicated region
    $region26: #{tpu_custom_call.1} parent=1 // pred_check
      _
    $region27: #{tpu_custom_call.1} parent=1 // pred_check_branch
      %39 = sbr.rel (0) target = $region29
    $region28: #{tpu_custom_call.1} parent=1 // pred_region
      %40 = dma.done [#allocation3], 512
    $region29: #{tpu_custom_call.1} parent=1 // pred_fallthru
      _
    %v41 = vld [vmem:[%s2] sm:$0xff]
    %v42 = vld [vmem:[%s2 + $0x8] sm:$0xff]
    %v43 = vld [vmem:[%s2 + $0x10] sm:$0xff]
    %v44 = vld [vmem:[%s2 + $0x18] sm:$0xff]
    %v45 = vld [vmem:[%s3] sm:$0xff]
    %v46 = vld [vmem:[%s3 + $0x8] sm:$0xff]
    %v47 = vld [vmem:[%s3 + $0x10] sm:$0xff]
    %v48 = vld [vmem:[%s3 + $0x18] sm:$0xff]
    %v49 = vld [vmem:[%s4] sm:$0xff]
    %v50 = vld [vmem:[%s4 + $0x8] sm:$0xff]
    %v51 = vld [vmem:[%s4 + $0x10] sm:$0xff]
    %v52 = vld [vmem:[%s4 + $0x18] sm:$0xff]
    %v53 = vld [vmem:[%s5] sm:$0xff]
    %v54 = vld [vmem:[%s5 + $0x8] sm:$0xff]
    %v55 = vld [vmem:[%s5 + $0x10] sm:$0xff]
    %v56 = vld [vmem:[%s5 + $0x18] sm:$0xff]
    %v57 = vld [vmem:[#allocation2] sm:$0xff]
    %v58 = vld [vmem:[#allocation2 + $0x8] sm:$0xff]
    %v59 = vld [vmem:[#allocation2 + $0x10] sm:$0xff]
    %v60 = vld [vmem:[#allocation2 + $0x18] sm:$0xff]
    %v61 = vld [vmem:[%s0] sm:$0x1]
    %63 = vset.pattern.permute.xlu0 0
    %64 = vperm.xlu0 %63, %v45
    %v65 = vpop.permute.xlu0 %64
    %68 = vset.pattern.permute.xlu0 0
    %69 = vperm.xlu0 %68, %v46
    %v70 = vpop.permute.xlu0 %69
    %73 = vset.pattern.permute.xlu0 0
    %74 = vperm.xlu0 %73, %v47
    %v75 = vpop.permute.xlu0 %74
    %78 = vset.pattern.permute.xlu0 0
    %79 = vperm.xlu0 %78, %v48
    %v80 = vpop.permute.xlu0 %79
    %v82 = vlaneseq
    %v83 = vshrl.u32 %v82, 7
    %v84 = vsub.s32 0, %v83
    %v85 = vrot.slane %v61, %v84
    %v86 = vmul.f32 %v65, %v85
    %v87 = vmul.f32 %v70, %v85
    %v88 = vmul.f32 %v75, %v85
    %v89 = vmul.f32 %v80, %v85
    %91 = vset.pattern.permute.xlu0 0
    %92 = vperm.xlu0 %91, %v49
    %v93 = vpop.permute.xlu0 %92
    %96 = vset.pattern.permute.xlu0 0
    %97 = vperm.xlu0 %96, %v50
    %v98 = vpop.permute.xlu0 %97
    %101 = vset.pattern.permute.xlu0 0
    %102 = vperm.xlu0 %101, %v51
    %v103 = vpop.permute.xlu0 %102
    %106 = vset.pattern.permute.xlu0 0
    %107 = vperm.xlu0 %106, %v52
    %v108 = vpop.permute.xlu0 %107
    %v110 = vadd.f32 %v86, %v93
    %v111 = vadd.f32 %v87, %v98
    %v112 = vadd.f32 %v88, %v103
    %v113 = vadd.f32 %v89, %v108
    %vm114 = vcmask 261120
    %v116 = vsel %vm114, %v41, 0
    %v119 = vsel %vm114, %v42, 0
    %v122 = vsel %vm114, %v43, 0
    %v125 = vsel %vm114, %v44, 0
    %127 = vmatprep.subr.mxu0 0.0
    %128 = vmatpush1.msra.mxu0 0.0
    %129 = vmatprep.subr.mxu0 0.0
    %130 = vmatpush1.msra.mxu0 0.0
    %131 = vmatprep.subr.mxu0 0.0
    %132 = vmatpush1.msra.mxu0 0.0
    %133 = vmatprep.subr.mxu0 0.0
    %134 = vmatpush1.msra.mxu0 0.0
    %135 = vmatprep.subr.mxu0 0.0
    %136 = vmatpush1.msra.mxu0 0.0
    %137 = vmatprep.subr.mxu0 0.0
    %138 = vmatpush1.msra.mxu0 0.0
    %139 = vmatprep.subr.mxu0 0.0
    %140 = vmatpush1.msra.mxu0 0.0
    %141 = vmatprep.subr.mxu0 0.0
    %142 = vmatpush1.msra.mxu0 0.0
    %143 = vmatprep.subr.mxu0 0.0
    %144 = vmatpush1.msra.mxu0 0.0
    %145 = vmatprep.subr.mxu0 0.0
    %146 = vmatpush1.msra.mxu0 0.0
    %147 = vmatprep.subr.mxu0 0.0
    %148 = vmatpush1.msra.mxu0 0.0
    %149 = vmatprep.subr.mxu0 0.0
    %150 = vmatpush1.msra.mxu0 0.0
    %151 = vmatprep.subr.mxu0 0.0
    %152 = vmatpush1.msra.mxu0 %v60
    %153 = vmatprep.subr.mxu0 0.0
    %154 = vmatpush1.msra.mxu0 %v59
    %155 = vmatprep.subr.mxu0 0.0
    %156 = vmatpush1.msra.mxu0 %v58
    %157 = vmatprep.subr.mxu0 0.0
    %158 = vmatpush1.msra.mxu0 %v57
    %159 = vmatprep.subr.mxu0 0.0
    %160 = vmatpush2.msra.mxu0 0.0
    %161 = vmatprep.subr.mxu0 0.0
    %162 = vmatpush2.msra.mxu0 0.0
    %163 = vmatprep.subr.mxu0 0.0
    %164 = vmatpush2.msra.mxu0 0.0
    %165 = vmatprep.subr.mxu0 0.0
    %166 = vmatpush2.msra.mxu0 0.0
    %167 = vmatprep.subr.mxu0 0.0
    %168 = vmatpush2.msra.mxu0 0.0
    %169 = vmatprep.subr.mxu0 0.0
    %170 = vmatpush2.msra.mxu0 0.0
    %171 = vmatprep.subr.mxu0 0.0
    %172 = vmatpush2.msra.mxu0 0.0
    %173 = vmatprep.subr.mxu0 0.0
    %174 = vmatpush2.msra.mxu0 0.0
    %175 = vmatprep.subr.mxu0 0.0
    %176 = vmatpush2.msra.mxu0 0.0
    %177 = vmatprep.subr.mxu0 0.0
    %178 = vmatpush2.msra.mxu0 0.0
    %179 = vmatprep.subr.mxu0 0.0
    %180 = vmatpush2.msra.mxu0 0.0
    %181 = vmatprep.subr.mxu0 0.0
    %182 = vmatpush2.msra.mxu0 0.0
    %183 = vmatprep.subr.mxu0 0.0
    %184 = vmatpush2.msra.mxu0 0.0
    %185 = vmatprep.subr.mxu0 0.0
    %186 = vmatpush2.msra.mxu0 0.0
    %187 = vmatprep.subr.mxu0 0.0
    %188 = vmatpush2.msra.mxu0 0.0
    %189 = vmatprep.subr.mxu0 0.0
    %190 = vmatpush2.msra.mxu0 0.0
    %191 = vmatprep.mubr.f32.mxu0 0.0
    %192 = vmatmul.mubr.f32.gmra.mxu0 %v116
    %v193 = vpop.f32.mrf.mxu0
    %v194 = vadd.f32 0.0, %v193
    %v195 = vpop.f32.mrf.mxu0
    %196 = vmatprep.mubr.f32.mxu0 0.0
    %197 = vmatmul.mubr.f32.gmra.mxu0 %v119
    %v198 = vpop.f32.mrf.mxu0
    %v199 = vadd.f32 0.0, %v198
    %v200 = vpop.f32.mrf.mxu0
    %201 = vmatprep.mubr.f32.mxu0 0.0
    %202 = vmatmul.mubr.f32.gmra.mxu0 %v122
    %v203 = vpop.f32.mrf.mxu0
    %v204 = vadd.f32 0.0, %v203
    %v205 = vpop.f32.mrf.mxu0
    %206 = vmatprep.mubr.f32.mxu0 0.0
    %207 = vmatmul.mubr.f32.gmra.mxu0 %v125
    %v208 = vpop.f32.mrf.mxu0
    %v209 = vadd.f32 0.0, %v208
    %v210 = vpop.f32.mrf.mxu0
    %211 = vdwg.mxu0
    %v212 = vadd.f32 %v110, %v194
    %v213 = vadd.f32 %v111, %v199
    %v214 = vadd.f32 %v112, %v204
    %v215 = vadd.f32 %v113, %v209
    %v216 = vtanh.pop %v212
    %v217 = vtanh.pop %v213
    %v218 = vtanh.pop %v214
    %v219 = vtanh.pop %v215
    %221 = vset.pattern.permute.xlu0 0
    %222 = vperm.xlu0 %221, %v53
    %v223 = vpop.permute.xlu0 %222
    %226 = vset.pattern.permute.xlu0 0
    %227 = vperm.xlu0 %226, %v54
    %v228 = vpop.permute.xlu0 %227
    %231 = vset.pattern.permute.xlu0 0
    %232 = vperm.xlu0 %231, %v55
    %v233 = vpop.permute.xlu0 %232
    %236 = vset.pattern.permute.xlu0 0
    %237 = vperm.xlu0 %236, %v56
    %v238 = vpop.permute.xlu0 %237
    %v240 = vmul.f32 %v223, %v216
    %v241 = vmul.f32 %v228, %v217
    %v242 = vmul.f32 %v233, %v218
    %v243 = vmul.f32 %v238, %v219
    %v244 = vadd.f32 %v240, %v241
    %v245 = vadd.f32 %v244, %v242
    %v246 = vadd.f32 %v245, %v243
    %v247 = vrot.slane %v246, 4
    %v248 = vadd.f32 %v246, %v247
    %v249 = vrot.slane %v248, 2
    %v250 = vadd.f32 %v248, %v249
    %v251 = vrot.slane %v250, 1
    %v252 = vadd.f32 %v250, %v251
    %253 = vst [vmem:[#allocation5] sm:$0x1] %v252
    %v254 = vld [vmem:[%s0 + $0x1] sm:$0x1]
    %v255 = vlaneseq
    %v256 = vshrl.u32 %v255, 7
    %v257 = vsub.s32 0, %v256
    %v258 = vrot.slane %v254, %v257
    %v259 = vmul.f32 %v65, %v258
    %v260 = vmul.f32 %v70, %v258
    %v261 = vmul.f32 %v75, %v258
    %v262 = vmul.f32 %v80, %v258
    %v263 = vadd.f32 %v259, %v93
    %v264 = vadd.f32 %v260, %v98
    %v265 = vadd.f32 %v261, %v103
    %v266 = vadd.f32 %v262, %v108
    %267 = vmatprep.subr.mxu0 0.0
    %268 = vmatpush1.msra.mxu0 0.0
    %269 = vmatprep.subr.mxu0 0.0
    %270 = vmatpush1.msra.mxu0 0.0
    %271 = vmatprep.subr.mxu0 0.0
    %272 = vmatpush1.msra.mxu0 0.0
    %273 = vmatprep.subr.mxu0 0.0
    %274 = vmatpush1.msra.mxu0 0.0
    %275 = vmatprep.subr.mxu0 0.0
    %276 = vmatpush1.msra.mxu0 0.0
    %277 = vmatprep.subr.mxu0 0.0
    %278 = vmatpush1.msra.mxu0 0.0
    %279 = vmatprep.subr.mxu0 0.0
    %280 = vmatpush1.msra.mxu0 0.0
    %281 = vmatprep.subr.mxu0 0.0
    %282 = vmatpush1.msra.mxu0 0.0
    %283 = vmatprep.subr.mxu0 0.0
    %284 = vmatpush1.msra.mxu0 0.0
    %285 = vmatprep.subr.mxu0 0.0
    %286 = vmatpush1.msra.mxu0 0.0
    %287 = vmatprep.subr.mxu0 0.0
    %288 = vmatpush1.msra.mxu0 0.0
    %289 = vmatprep.subr.mxu0 0.0
    %290 = vmatpush1.msra.mxu0 0.0
    %291 = vmatprep.subr.mxu0 0.0
    %292 = vmatpush1.msra.mxu0 %v219
    %293 = vmatprep.subr.mxu0 0.0
    %294 = vmatpush1.msra.mxu0 %v218
    %295 = vmatprep.subr.mxu0 0.0
    %296 = vmatpush1.msra.mxu0 %v217
    %297 = vmatprep.subr.mxu0 0.0
    %298 = vmatpush1.msra.mxu0 %v216
    %299 = vmatprep.subr.mxu0 0.0
    %300 = vmatpush2.msra.mxu0 0.0
    %301 = vmatprep.subr.mxu0 0.0
    %302 = vmatpush2.msra.mxu0 0.0
    %303 = vmatprep.subr.mxu0 0.0
    %304 = vmatpush2.msra.mxu0 0.0
    %305 = vmatprep.subr.mxu0 0.0
    %306 = vmatpush2.msra.mxu0 0.0
    %307 = vmatprep.subr.mxu0 0.0
    %308 = vmatpush2.msra.mxu0 0.0
    %309 = vmatprep.subr.mxu0 0.0
    %310 = vmatpush2.msra.mxu0 0.0
    %311 = vmatprep.subr.mxu0 0.0
    %312 = vmatpush2.msra.mxu0 0.0
    %313 = vmatprep.subr.mxu0 0.0
    %314 = vmatpush2.msra.mxu0 0.0
    %315 = vmatprep.subr.mxu0 0.0
    %316 = vmatpush2.msra.mxu0 0.0
    %317 = vmatprep.subr.mxu0 0.0
    %318 = vmatpush2.msra.mxu0 0.0
    %319 = vmatprep.subr.mxu0 0.0
    %320 = vmatpush2.msra.mxu0 0.0
    %321 = vmatprep.subr.mxu0 0.0
    %322 = vmatpush2.msra.mxu0 0.0
    %323 = vmatprep.subr.mxu0 0.0
    %324 = vmatpush2.msra.mxu0 0.0
    %325 = vmatprep.subr.mxu0 0.0
    %326 = vmatpush2.msra.mxu0 0.0
    %327 = vmatprep.subr.mxu0 0.0
    %328 = vmatpush2.msra.mxu0 0.0
    %329 = vmatprep.subr.mxu0 0.0
    %330 = vmatpush2.msra.mxu0 0.0
    %331 = vmatprep.mubr.f32.mxu0 0.0
    %332 = vmatmul.mubr.f32.gmra.mxu0 %v116
    %v333 = vpop.f32.mrf.mxu0
    %v334 = vadd.f32 0.0, %v333
    %v335 = vpop.f32.mrf.mxu0
    %336 = vmatprep.mubr.f32.mxu0 0.0
    %337 = vmatmul.mubr.f32.gmra.mxu0 %v119
    %v338 = vpop.f32.mrf.mxu0
    %v339 = vadd.f32 0.0, %v338
    %v340 = vpop.f32.mrf.mxu0
    %341 = vmatprep.mubr.f32.mxu0 0.0
    %342 = vmatmul.mubr.f32.gmra.mxu0 %v122
    %v343 = vpop.f32.mrf.mxu0
    %v344 = vadd.f32 0.0, %v343
    %v345 = vpop.f32.mrf.mxu0
    %346 = vmatprep.mubr.f32.mxu0 0.0
    %347 = vmatmul.mubr.f32.gmra.mxu0 %v125
    %v348 = vpop.f32.mrf.mxu0
    %v349 = vadd.f32 0.0, %v348
    %v350 = vpop.f32.mrf.mxu0
    %351 = vdwg.mxu0
    %v352 = vadd.f32 %v263, %v334
    %v353 = vadd.f32 %v264, %v339
    %v354 = vadd.f32 %v265, %v344
    %v355 = vadd.f32 %v266, %v349
    %v356 = vtanh.pop %v352
    %v357 = vtanh.pop %v353
    %v358 = vtanh.pop %v354
    %v359 = vtanh.pop %v355
    %v360 = vmul.f32 %v223, %v356
    %v361 = vmul.f32 %v228, %v357
    %v362 = vmul.f32 %v233, %v358
    %v363 = vmul.f32 %v238, %v359
    %v364 = vadd.f32 %v360, %v361
    %v365 = vadd.f32 %v364, %v362
    %v366 = vadd.f32 %v365, %v363
    %v367 = vrot.slane %v366, 4
    %v368 = vadd.f32 %v366, %v367
    %v369 = vrot.slane %v368, 2
    %v370 = vadd.f32 %v368, %v369
    %v371 = vrot.slane %v370, 1
    %v372 = vadd.f32 %v370, %v371
    %373 = vst [vmem:[#allocation5 + $0x1] sm:$0x1] %v372
    %v374 = vld [vmem:[%s0 + $0x2] sm:$0x1]
    %v375 = vlaneseq
    %v376 = vshrl.u32 %v375, 7
    %v377 = vsub.s32 0, %v376
    %v378 = vrot.slane %v374, %v377
    %v379 = vmul.f32 %v65, %v378
    %v380 = vmul.f32 %v70, %v378
    %v381 = vmul.f32 %v75, %v378
    %v382 = vmul.f32 %v80, %v378
    %v383 = vadd.f32 %v379, %v93
    %v384 = vadd.f32 %v380, %v98
    %v385 = vadd.f32 %v381, %v103
    %v386 = vadd.f32 %v382, %v108
    %387 = vmatprep.subr.mxu0 0.0
    %388 = vmatpush1.msra.mxu0 0.0
    %389 = vmatprep.subr.mxu0 0.0
    %390 = vmatpush1.msra.mxu0 0.0
    %391 = vmatprep.subr.mxu0 0.0
    %392 = vmatpush1.msra.mxu0 0.0
    %393 = vmatprep.subr.mxu0 0.0
    %394 = vmatpush1.msra.mxu0 0.0
    %395 = vmatprep.subr.mxu0 0.0
    %396 = vmatpush1.msra.mxu0 0.0
    %397 = vmatprep.subr.mxu0 0.0
    %398 = vmatpush1.msra.mxu0 0.0
    %399 = vmatprep.subr.mxu0 0.0
    %400 = vmatpush1.msra.mxu0 0.0
    %401 = vmatprep.subr.mxu0 0.0
    %402 = vmatpush1.msra.mxu0 0.0
    %403 = vmatprep.subr.mxu0 0.0
    %404 = vmatpush1.msra.mxu0 0.0
    %405 = vmatprep.subr.mxu0 0.0
    %406 = vmatpush1.msra.mxu0 0.0
    %407 = vmatprep.subr.mxu0 0.0
    %408 = vmatpush1.msra.mxu0 0.0
    %409 = vmatprep.subr.mxu0 0.0
    %410 = vmatpush1.msra.mxu0 0.0
    %411 = vmatprep.subr.mxu0 0.0
    %412 = vmatpush1.msra.mxu0 %v359
    %413 = vmatprep.subr.mxu0 0.0
    %414 = vmatpush1.msra.mxu0 %v358
    %415 = vmatprep.subr.mxu0 0.0
    %416 = vmatpush1.msra.mxu0 %v357
    %417 = vmatprep.subr.mxu0 0.0
    %418 = vmatpush1.msra.mxu0 %v356
    %419 = vmatprep.subr.mxu0 0.0
    %420 = vmatpush2.msra.mxu0 0.0
    %421 = vmatprep.subr.mxu0 0.0
    %422 = vmatpush2.msra.mxu0 0.0
    %423 = vmatprep.subr.mxu0 0.0
    %424 = vmatpush2.msra.mxu0 0.0
    %425 = vmatprep.subr.mxu0 0.0
    %426 = vmatpush2.msra.mxu0 0.0
    %427 = vmatprep.subr.mxu0 0.0
    %428 = vmatpush2.msra.mxu0 0.0
    %429 = vmatprep.subr.mxu0 0.0
    %430 = vmatpush2.msra.mxu0 0.0
    %431 = vmatprep.subr.mxu0 0.0
    %432 = vmatpush2.msra.mxu0 0.0
    %433 = vmatprep.subr.mxu0 0.0
    %434 = vmatpush2.msra.mxu0 0.0
    %435 = vmatprep.subr.mxu0 0.0
    %436 = vmatpush2.msra.mxu0 0.0
    %437 = vmatprep.subr.mxu0 0.0
    %438 = vmatpush2.msra.mxu0 0.0
    %439 = vmatprep.subr.mxu0 0.0
    %440 = vmatpush2.msra.mxu0 0.0
    %441 = vmatprep.subr.mxu0 0.0
    %442 = vmatpush2.msra.mxu0 0.0
    %443 = vmatprep.subr.mxu0 0.0
    %444 = vmatpush2.msra.mxu0 0.0
    %445 = vmatprep.subr.mxu0 0.0
    %446 = vmatpush2.msra.mxu0 0.0
    %447 = vmatprep.subr.mxu0 0.0
    %448 = vmatpush2.msra.mxu0 0.0
    %449 = vmatprep.subr.mxu0 0.0
    %450 = vmatpush2.msra.mxu0 0.0
    %451 = vmatprep.mubr.f32.mxu0 0.0
    %452 = vmatmul.mubr.f32.gmra.mxu0 %v116
    %v453 = vpop.f32.mrf.mxu0
    %v454 = vadd.f32 0.0, %v453
    %v455 = vpop.f32.mrf.mxu0
    %456 = vmatprep.mubr.f32.mxu0 0.0
    %457 = vmatmul.mubr.f32.gmra.mxu0 %v119
    %v458 = vpop.f32.mrf.mxu0
    %v459 = vadd.f32 0.0, %v458
    %v460 = vpop.f32.mrf.mxu0
    %461 = vmatprep.mubr.f32.mxu0 0.0
    %462 = vmatmul.mubr.f32.gmra.mxu0 %v122
    %v463 = vpop.f32.mrf.mxu0
    %v464 = vadd.f32 0.0, %v463
    %v465 = vpop.f32.mrf.mxu0
    %466 = vmatprep.mubr.f32.mxu0 0.0
    %467 = vmatmul.mubr.f32.gmra.mxu0 %v125
    %v468 = vpop.f32.mrf.mxu0
    %v469 = vadd.f32 0.0, %v468
    %v470 = vpop.f32.mrf.mxu0
    %471 = vdwg.mxu0
    %v472 = vadd.f32 %v383, %v454
    %v473 = vadd.f32 %v384, %v459
    %v474 = vadd.f32 %v385, %v464
    %v475 = vadd.f32 %v386, %v469
    %v476 = vtanh.pop %v472
    %v477 = vtanh.pop %v473
    %v478 = vtanh.pop %v474
    %v479 = vtanh.pop %v475
    %v480 = vmul.f32 %v223, %v476
    %v481 = vmul.f32 %v228, %v477
    %v482 = vmul.f32 %v233, %v478
    %v483 = vmul.f32 %v238, %v479
    %v484 = vadd.f32 %v480, %v481
    %v485 = vadd.f32 %v484, %v482
    %v486 = vadd.f32 %v485, %v483
    %v487 = vrot.slane %v486, 4
    %v488 = vadd.f32 %v486, %v487
    %v489 = vrot.slane %v488, 2
    %v490 = vadd.f32 %v488, %v489
    %v491 = vrot.slane %v490, 1
    %v492 = vadd.f32 %v490, %v491
    %493 = vst [vmem:[#allocation5 + $0x2] sm:$0x1] %v492
    %v494 = vld [vmem:[%s0 + $0x3] sm:$0x1]
    %v495 = vlaneseq
    %v496 = vshrl.u32 %v495, 7
    %v497 = vsub.s32 0, %v496
    %v498 = vrot.slane %v494, %v497
    %v499 = vmul.f32 %v65, %v498
    %v500 = vmul.f32 %v70, %v498
    %v501 = vmul.f32 %v75, %v498
    %v502 = vmul.f32 %v80, %v498
    %v503 = vadd.f32 %v499, %v93
    %v504 = vadd.f32 %v500, %v98
    %v505 = vadd.f32 %v501, %v103
    %v506 = vadd.f32 %v502, %v108
    %507 = vmatprep.subr.mxu0 0.0
    %508 = vmatpush1.msra.mxu0 0.0
    %509 = vmatprep.subr.mxu0 0.0
    %510 = vmatpush1.msra.mxu0 0.0
    %511 = vmatprep.subr.mxu0 0.0
    %512 = vmatpush1.msra.mxu0 0.0
    %513 = vmatprep.subr.mxu0 0.0
    %514 = vmatpush1.msra.mxu0 0.0
    %515 = vmatprep.subr.mxu0 0.0
    %516 = vmatpush1.msra.mxu0 0.0
    %517 = vmatprep.subr.mxu0 0.0
    %518 = vmatpush1.msra.mxu0 0.0
    %519 = vmatprep.subr.mxu0 0.0
    %520 = vmatpush1.msra.mxu0 0.0
    %521 = vmatprep.subr.mxu0 0.0
    %522 = vmatpush1.msra.mxu0 0.0
    %523 = vmatprep.subr.mxu0 0.0
    %524 = vmatpush1.msra.mxu0 0.0
    %525 = vmatprep.subr.mxu0 0.0
    %526 = vmatpush1.msra.mxu0 0.0
    %527 = vmatprep.subr.mxu0 0.0
    %528 = vmatpush1.msra.mxu0 0.0
    %529 = vmatprep.subr.mxu0 0.0
    %530 = vmatpush1.msra.mxu0 0.0
    %531 = vmatprep.subr.mxu0 0.0
    %532 = vmatpush1.msra.mxu0 %v479
    %533 = vmatprep.subr.mxu0 0.0
    %534 = vmatpush1.msra.mxu0 %v478
    %535 = vmatprep.subr.mxu0 0.0
    %536 = vmatpush1.msra.mxu0 %v477
    %537 = vmatprep.subr.mxu0 0.0
    %538 = vmatpush1.msra.mxu0 %v476
    %539 = vmatprep.subr.mxu0 0.0
    %540 = vmatpush2.msra.mxu0 0.0
    %541 = vmatprep.subr.mxu0 0.0
    %542 = vmatpush2.msra.mxu0 0.0
    %543 = vmatprep.subr.mxu0 0.0
    %544 = vmatpush2.msra.mxu0 0.0
    %545 = vmatprep.subr.mxu0 0.0
    %546 = vmatpush2.msra.mxu0 0.0
    %547 = vmatprep.subr.mxu0 0.0
    %548 = vmatpush2.msra.mxu0 0.0
    %549 = vmatprep.subr.mxu0 0.0
    %550 = vmatpush2.msra.mxu0 0.0
    %551 = vmatprep.subr.mxu0 0.0
    %552 = vmatpush2.msra.mxu0 0.0
    %553 = vmatprep.subr.mxu0 0.0
    %554 = vmatpush2.msra.mxu0 0.0
    %555 = vmatprep.subr.mxu0 0.0
    %556 = vmatpush2.msra.mxu0 0.0
    %557 = vmatprep.subr.mxu0 0.0
    %558 = vmatpush2.msra.mxu0 0.0
    %559 = vmatprep.subr.mxu0 0.0
    %560 = vmatpush2.msra.mxu0 0.0
    %561 = vmatprep.subr.mxu0 0.0
    %562 = vmatpush2.msra.mxu0 0.0
    %563 = vmatprep.subr.mxu0 0.0
    %564 = vmatpush2.msra.mxu0 0.0
    %565 = vmatprep.subr.mxu0 0.0
    %566 = vmatpush2.msra.mxu0 0.0
    %567 = vmatprep.subr.mxu0 0.0
    %568 = vmatpush2.msra.mxu0 0.0
    %569 = vmatprep.subr.mxu0 0.0
    %570 = vmatpush2.msra.mxu0 0.0
    %571 = vmatprep.mubr.f32.mxu0 0.0
    %572 = vmatmul.mubr.f32.gmra.mxu0 %v116
    %v573 = vpop.f32.mrf.mxu0
    %v574 = vadd.f32 0.0, %v573
    %v575 = vpop.f32.mrf.mxu0
    %576 = vmatprep.mubr.f32.mxu0 0.0
    %577 = vmatmul.mubr.f32.gmra.mxu0 %v119
    %v578 = vpop.f32.mrf.mxu0
    %v579 = vadd.f32 0.0, %v578
    %v580 = vpop.f32.mrf.mxu0
    %581 = vmatprep.mubr.f32.mxu0 0.0
    %582 = vmatmul.mubr.f32.gmra.mxu0 %v122
    %v583 = vpop.f32.mrf.mxu0
    %v584 = vadd.f32 0.0, %v583
    %v585 = vpop.f32.mrf.mxu0
    %586 = vmatprep.mubr.f32.mxu0 0.0
    %587 = vmatmul.mubr.f32.gmra.mxu0 %v125
    %v588 = vpop.f32.mrf.mxu0
    %v589 = vadd.f32 0.0, %v588
    %v590 = vpop.f32.mrf.mxu0
    %591 = vdwg.mxu0
    %v592 = vadd.f32 %v503, %v574
    %v593 = vadd.f32 %v504, %v579
    %v594 = vadd.f32 %v505, %v584
    %v595 = vadd.f32 %v506, %v589
    %v596 = vtanh.pop %v592
    %v597 = vtanh.pop %v593
    %v598 = vtanh.pop %v594
    %v599 = vtanh.pop %v595
    %v600 = vmul.f32 %v223, %v596
    %v601 = vmul.f32 %v228, %v597
    %v602 = vmul.f32 %v233, %v598
    %v603 = vmul.f32 %v238, %v599
    %v604 = vadd.f32 %v600, %v601
    %v605 = vadd.f32 %v604, %v602
    %v606 = vadd.f32 %v605, %v603
    %v607 = vrot.slane %v606, 4
    %v608 = vadd.f32 %v606, %v607
    %v609 = vrot.slane %v608, 2
    %v610 = vadd.f32 %v608, %v609
    %v611 = vrot.slane %v610, 1
    %v612 = vadd.f32 %v610, %v611
    %613 = vst [vmem:[#allocation5 + $0x3] sm:$0x1] %v612
    %v614 = vld [vmem:[%s0 + $0x4] sm:$0x1]
    %v615 = vlaneseq
    %v616 = vshrl.u32 %v615, 7
    %v617 = vsub.s32 0, %v616
    %v618 = vrot.slane %v614, %v617
    %v619 = vmul.f32 %v65, %v618
    %v620 = vmul.f32 %v70, %v618
    %v621 = vmul.f32 %v75, %v618
    %v622 = vmul.f32 %v80, %v618
    %v623 = vadd.f32 %v619, %v93
    %v624 = vadd.f32 %v620, %v98
    %v625 = vadd.f32 %v621, %v103
    %v626 = vadd.f32 %v622, %v108
    %627 = vmatprep.subr.mxu0 0.0
    %628 = vmatpush1.msra.mxu0 0.0
    %629 = vmatprep.subr.mxu0 0.0
    %630 = vmatpush1.msra.mxu0 0.0
    %631 = vmatprep.subr.mxu0 0.0
    %632 = vmatpush1.msra.mxu0 0.0
    %633 = vmatprep.subr.mxu0 0.0
    %634 = vmatpush1.msra.mxu0 0.0
    %635 = vmatprep.subr.mxu0 0.0
    %636 = vmatpush1.msra.mxu0 0.0
    %637 = vmatprep.subr.mxu0 0.0
    %638 = vmatpush1.msra.mxu0 0.0
    %639 = vmatprep.subr.mxu0 0.0
    %640 = vmatpush1.msra.mxu0 0.0
    %641 = vmatprep.subr.mxu0 0.0
    %642 = vmatpush1.msra.mxu0 0.0
    %643 = vmatprep.subr.mxu0 0.0
    %644 = vmatpush1.msra.mxu0 0.0
    %645 = vmatprep.subr.mxu0 0.0
    %646 = vmatpush1.msra.mxu0 0.0
    %647 = vmatprep.subr.mxu0 0.0
    %648 = vmatpush1.msra.mxu0 0.0
    %649 = vmatprep.subr.mxu0 0.0
    %650 = vmatpush1.msra.mxu0 0.0
    %651 = vmatprep.subr.mxu0 0.0
    %652 = vmatpush1.msra.mxu0 %v599
    %653 = vmatprep.subr.mxu0 0.0
    %654 = vmatpush1.msra.mxu0 %v598
    %655 = vmatprep.subr.mxu0 0.0
    %656 = vmatpush1.msra.mxu0 %v597
    %657 = vmatprep.subr.mxu0 0.0
    %658 = vmatpush1.msra.mxu0 %v596
    %659 = vmatprep.subr.mxu0 0.0
    %660 = vmatpush2.msra.mxu0 0.0
    %661 = vmatprep.subr.mxu0 0.0
    %662 = vmatpush2.msra.mxu0 0.0
    %663 = vmatprep.subr.mxu0 0.0
    %664 = vmatpush2.msra.mxu0 0.0
    %665 = vmatprep.subr.mxu0 0.0
    %666 = vmatpush2.msra.mxu0 0.0
    %667 = vmatprep.subr.mxu0 0.0
    %668 = vmatpush2.msra.mxu0 0.0
    %669 = vmatprep.subr.mxu0 0.0
    %670 = vmatpush2.msra.mxu0 0.0
    %671 = vmatprep.subr.mxu0 0.0
    %672 = vmatpush2.msra.mxu0 0.0
    %673 = vmatprep.subr.mxu0 0.0
    %674 = vmatpush2.msra.mxu0 0.0
    %675 = vmatprep.subr.mxu0 0.0
    %676 = vmatpush2.msra.mxu0 0.0
    %677 = vmatprep.subr.mxu0 0.0
    %678 = vmatpush2.msra.mxu0 0.0
    %679 = vmatprep.subr.mxu0 0.0
    %680 = vmatpush2.msra.mxu0 0.0
    %681 = vmatprep.subr.mxu0 0.0
    %682 = vmatpush2.msra.mxu0 0.0
    %683 = vmatprep.subr.mxu0 0.0
    %684 = vmatpush2.msra.mxu0 0.0
    %685 = vmatprep.subr.mxu0 0.0
    %686 = vmatpush2.msra.mxu0 0.0
    %687 = vmatprep.subr.mxu0 0.0
    %688 = vmatpush2.msra.mxu0 0.0
    %689 = vmatprep.subr.mxu0 0.0
    %690 = vmatpush2.msra.mxu0 0.0
    %691 = vmatprep.mubr.f32.mxu0 0.0
    %692 = vmatmul.mubr.f32.gmra.mxu0 %v116
    %v693 = vpop.f32.mrf.mxu0
    %v694 = vadd.f32 0.0, %v693
    %v695 = vpop.f32.mrf.mxu0
    %696 = vmatprep.mubr.f32.mxu0 0.0
    %697 = vmatmul.mubr.f32.gmra.mxu0 %v119
    %v698 = vpop.f32.mrf.mxu0
    %v699 = vadd.f32 0.0, %v698
    %v700 = vpop.f32.mrf.mxu0
    %701 = vmatprep.mubr.f32.mxu0 0.0
    %702 = vmatmul.mubr.f32.gmra.mxu0 %v122
    %v703 = vpop.f32.mrf.mxu0
    %v704 = vadd.f32 0.0, %v703
    %v705 = vpop.f32.mrf.mxu0
    %706 = vmatprep.mubr.f32.mxu0 0.0
    %707 = vmatmul.mubr.f32.gmra.mxu0 %v125
    %v708 = vpop.f32.mrf.mxu0
    %v709 = vadd.f32 0.0, %v708
    %v710 = vpop.f32.mrf.mxu0
    %711 = vdwg.mxu0
    %v712 = vadd.f32 %v623, %v694
    %v713 = vadd.f32 %v624, %v699
    %v714 = vadd.f32 %v625, %v704
    %v715 = vadd.f32 %v626, %v709
    %v716 = vtanh.pop %v712
    %v717 = vtanh.pop %v713
    %v718 = vtanh.pop %v714
    %v719 = vtanh.pop %v715
    %v720 = vmul.f32 %v223, %v716
    %v721 = vmul.f32 %v228, %v717
    %v722 = vmul.f32 %v233, %v718
    %v723 = vmul.f32 %v238, %v719
    %v724 = vadd.f32 %v720, %v721
    %v725 = vadd.f32 %v724, %v722
    %v726 = vadd.f32 %v725, %v723
    %v727 = vrot.slane %v726, 4
    %v728 = vadd.f32 %v726, %v727
    %v729 = vrot.slane %v728, 2
    %v730 = vadd.f32 %v728, %v729
    %v731 = vrot.slane %v730, 1
    %v732 = vadd.f32 %v730, %v731
    %733 = vst [vmem:[#allocation5 + $0x4] sm:$0x1] %v732
    %v734 = vld [vmem:[%s0 + $0x5] sm:$0x1]
    %v735 = vlaneseq
    %v736 = vshrl.u32 %v735, 7
    %v737 = vsub.s32 0, %v736
    %v738 = vrot.slane %v734, %v737
    %v739 = vmul.f32 %v65, %v738
    %v740 = vmul.f32 %v70, %v738
    %v741 = vmul.f32 %v75, %v738
    %v742 = vmul.f32 %v80, %v738
    %v743 = vadd.f32 %v739, %v93
    %v744 = vadd.f32 %v740, %v98
    %v745 = vadd.f32 %v741, %v103
    %v746 = vadd.f32 %v742, %v108
    %747 = vmatprep.subr.mxu0 0.0
    %748 = vmatpush1.msra.mxu0 0.0
    %749 = vmatprep.subr.mxu0 0.0
    %750 = vmatpush1.msra.mxu0 0.0
    %751 = vmatprep.subr.mxu0 0.0
    %752 = vmatpush1.msra.mxu0 0.0
    %753 = vmatprep.subr.mxu0 0.0
    %754 = vmatpush1.msra.mxu0 0.0
    %755 = vmatprep.subr.mxu0 0.0
    %756 = vmatpush1.msra.mxu0 0.0
    %757 = vmatprep.subr.mxu0 0.0
    %758 = vmatpush1.msra.mxu0 0.0
    %759 = vmatprep.subr.mxu0 0.0
    %760 = vmatpush1.msra.mxu0 0.0
    %761 = vmatprep.subr.mxu0 0.0
    %762 = vmatpush1.msra.mxu0 0.0
    %763 = vmatprep.subr.mxu0 0.0
    %764 = vmatpush1.msra.mxu0 0.0
    %765 = vmatprep.subr.mxu0 0.0
    %766 = vmatpush1.msra.mxu0 0.0
    %767 = vmatprep.subr.mxu0 0.0
    %768 = vmatpush1.msra.mxu0 0.0
    %769 = vmatprep.subr.mxu0 0.0
    %770 = vmatpush1.msra.mxu0 0.0
    %771 = vmatprep.subr.mxu0 0.0
    %772 = vmatpush1.msra.mxu0 %v719
    %773 = vmatprep.subr.mxu0 0.0
    %774 = vmatpush1.msra.mxu0 %v718
    %775 = vmatprep.subr.mxu0 0.0
    %776 = vmatpush1.msra.mxu0 %v717
    %777 = vmatprep.subr.mxu0 0.0
    %778 = vmatpush1.msra.mxu0 %v716
    %779 = vmatprep.subr.mxu0 0.0
    %780 = vmatpush2.msra.mxu0 0.0
    %781 = vmatprep.subr.mxu0 0.0
    %782 = vmatpush2.msra.mxu0 0.0
    %783 = vmatprep.subr.mxu0 0.0
    %784 = vmatpush2.msra.mxu0 0.0
    %785 = vmatprep.subr.mxu0 0.0
    %786 = vmatpush2.msra.mxu0 0.0
    %787 = vmatprep.subr.mxu0 0.0
    %788 = vmatpush2.msra.mxu0 0.0
    %789 = vmatprep.subr.mxu0 0.0
    %790 = vmatpush2.msra.mxu0 0.0
    %791 = vmatprep.subr.mxu0 0.0
    %792 = vmatpush2.msra.mxu0 0.0
    %793 = vmatprep.subr.mxu0 0.0
    %794 = vmatpush2.msra.mxu0 0.0
    %795 = vmatprep.subr.mxu0 0.0
    %796 = vmatpush2.msra.mxu0 0.0
    %797 = vmatprep.subr.mxu0 0.0
    %798 = vmatpush2.msra.mxu0 0.0
    %799 = vmatprep.subr.mxu0 0.0
    %800 = vmatpush2.msra.mxu0 0.0
    %801 = vmatprep.subr.mxu0 0.0
    %802 = vmatpush2.msra.mxu0 0.0
    %803 = vmatprep.subr.mxu0 0.0
    %804 = vmatpush2.msra.mxu0 0.0
    %805 = vmatprep.subr.mxu0 0.0
    %806 = vmatpush2.msra.mxu0 0.0
    %807 = vmatprep.subr.mxu0 0.0
    %808 = vmatpush2.msra.mxu0 0.0
    %809 = vmatprep.subr.mxu0 0.0
    %810 = vmatpush2.msra.mxu0 0.0
    %811 = vmatprep.mubr.f32.mxu0 0.0
    %812 = vmatmul.mubr.f32.gmra.mxu0 %v116
    %v813 = vpop.f32.mrf.mxu0
    %v814 = vadd.f32 0.0, %v813
    %v815 = vpop.f32.mrf.mxu0
    %816 = vmatprep.mubr.f32.mxu0 0.0
    %817 = vmatmul.mubr.f32.gmra.mxu0 %v119
    %v818 = vpop.f32.mrf.mxu0
    %v819 = vadd.f32 0.0, %v818
    %v820 = vpop.f32.mrf.mxu0
    %821 = vmatprep.mubr.f32.mxu0 0.0
    %822 = vmatmul.mubr.f32.gmra.mxu0 %v122
    %v823 = vpop.f32.mrf.mxu0
    %v824 = vadd.f32 0.0, %v823
    %v825 = vpop.f32.mrf.mxu0
    %826 = vmatprep.mubr.f32.mxu0 0.0
    %827 = vmatmul.mubr.f32.gmra.mxu0 %v125
    %v828 = vpop.f32.mrf.mxu0
    %v829 = vadd.f32 0.0, %v828
    %v830 = vpop.f32.mrf.mxu0
    %831 = vdwg.mxu0
    %v832 = vadd.f32 %v743, %v814
    %v833 = vadd.f32 %v744, %v819
    %v834 = vadd.f32 %v745, %v824
    %v835 = vadd.f32 %v746, %v829
    %v836 = vtanh.pop %v832
    %v837 = vtanh.pop %v833
    %v838 = vtanh.pop %v834
    %v839 = vtanh.pop %v835
    %v840 = vmul.f32 %v223, %v836
    %v841 = vmul.f32 %v228, %v837
    %v842 = vmul.f32 %v233, %v838
    %v843 = vmul.f32 %v238, %v839
    %v844 = vadd.f32 %v840, %v841
    %v845 = vadd.f32 %v844, %v842
    %v846 = vadd.f32 %v845, %v843
    %v847 = vrot.slane %v846, 4
    %v848 = vadd.f32 %v846, %v847
    %v849 = vrot.slane %v848, 2
    %v850 = vadd.f32 %v848, %v849
    %v851 = vrot.slane %v850, 1
    %v852 = vadd.f32 %v850, %v851
    %853 = vst [vmem:[#allocation5 + $0x5] sm:$0x1] %v852
    %v854 = vld [vmem:[%s0 + $0x6] sm:$0x1]
    %v855 = vlaneseq
    %v856 = vshrl.u32 %v855, 7
    %v857 = vsub.s32 0, %v856
    %v858 = vrot.slane %v854, %v857
    %v859 = vmul.f32 %v65, %v858
    %v860 = vmul.f32 %v70, %v858
    %v861 = vmul.f32 %v75, %v858
    %v862 = vmul.f32 %v80, %v858
    %v863 = vadd.f32 %v859, %v93
    %v864 = vadd.f32 %v860, %v98
    %v865 = vadd.f32 %v861, %v103
    %v866 = vadd.f32 %v862, %v108
    %867 = vmatprep.subr.mxu0 0.0
    %868 = vmatpush1.msra.mxu0 0.0
    %869 = vmatprep.subr.mxu0 0.0
    %870 = vmatpush1.msra.mxu0 0.0
    %871 = vmatprep.subr.mxu0 0.0
    %872 = vmatpush1.msra.mxu0 0.0
    %873 = vmatprep.subr.mxu0 0.0
    %874 = vmatpush1.msra.mxu0 0.0
    %875 = vmatprep.subr.mxu0 0.0
    %876 = vmatpush1.msra.mxu0 0.0
    %877 = vmatprep.subr.mxu0 0.0
    %878 = vmatpush1.msra.mxu0 0.0
    %879 = vmatprep.subr.mxu0 0.0
    %880 = vmatpush1.msra.mxu0 0.0
    %881 = vmatprep.subr.mxu0 0.0
    %882 = vmatpush1.msra.mxu0 0.0
    %883 = vmatprep.subr.mxu0 0.0
    %884 = vmatpush1.msra.mxu0 0.0
    %885 = vmatprep.subr.mxu0 0.0
    %886 = vmatpush1.msra.mxu0 0.0
    %887 = vmatprep.subr.mxu0 0.0
    %888 = vmatpush1.msra.mxu0 0.0
    %889 = vmatprep.subr.mxu0 0.0
    %890 = vmatpush1.msra.mxu0 0.0
    %891 = vmatprep.subr.mxu0 0.0
    %892 = vmatpush1.msra.mxu0 %v839
    %893 = vmatprep.subr.mxu0 0.0
    %894 = vmatpush1.msra.mxu0 %v838
    %895 = vmatprep.subr.mxu0 0.0
    %896 = vmatpush1.msra.mxu0 %v837
    %897 = vmatprep.subr.mxu0 0.0
    %898 = vmatpush1.msra.mxu0 %v836
    %899 = vmatprep.subr.mxu0 0.0
    %900 = vmatpush2.msra.mxu0 0.0
    %901 = vmatprep.subr.mxu0 0.0
    %902 = vmatpush2.msra.mxu0 0.0
    %903 = vmatprep.subr.mxu0 0.0
    %904 = vmatpush2.msra.mxu0 0.0
    %905 = vmatprep.subr.mxu0 0.0
    %906 = vmatpush2.msra.mxu0 0.0
    %907 = vmatprep.subr.mxu0 0.0
    %908 = vmatpush2.msra.mxu0 0.0
    %909 = vmatprep.subr.mxu0 0.0
    %910 = vmatpush2.msra.mxu0 0.0
    %911 = vmatprep.subr.mxu0 0.0
    %912 = vmatpush2.msra.mxu0 0.0
    %913 = vmatprep.subr.mxu0 0.0
    %914 = vmatpush2.msra.mxu0 0.0
    %915 = vmatprep.subr.mxu0 0.0
    %916 = vmatpush2.msra.mxu0 0.0
    %917 = vmatprep.subr.mxu0 0.0
    %918 = vmatpush2.msra.mxu0 0.0
    %919 = vmatprep.subr.mxu0 0.0
    %920 = vmatpush2.msra.mxu0 0.0
    %921 = vmatprep.subr.mxu0 0.0
    %922 = vmatpush2.msra.mxu0 0.0
    %923 = vmatprep.subr.mxu0 0.0
    %924 = vmatpush2.msra.mxu0 0.0
    %925 = vmatprep.subr.mxu0 0.0
    %926 = vmatpush2.msra.mxu0 0.0
    %927 = vmatprep.subr.mxu0 0.0
    %928 = vmatpush2.msra.mxu0 0.0
    %929 = vmatprep.subr.mxu0 0.0
    %930 = vmatpush2.msra.mxu0 0.0
    %931 = vmatprep.mubr.f32.mxu0 0.0
    %932 = vmatmul.mubr.f32.gmra.mxu0 %v116
    %v933 = vpop.f32.mrf.mxu0
    %v934 = vadd.f32 0.0, %v933
    %v935 = vpop.f32.mrf.mxu0
    %936 = vmatprep.mubr.f32.mxu0 0.0
    %937 = vmatmul.mubr.f32.gmra.mxu0 %v119
    %v938 = vpop.f32.mrf.mxu0
    %v939 = vadd.f32 0.0, %v938
    %v940 = vpop.f32.mrf.mxu0
    %941 = vmatprep.mubr.f32.mxu0 0.0
    %942 = vmatmul.mubr.f32.gmra.mxu0 %v122
    %v943 = vpop.f32.mrf.mxu0
    %v944 = vadd.f32 0.0, %v943
    %v945 = vpop.f32.mrf.mxu0
    %946 = vmatprep.mubr.f32.mxu0 0.0
    %947 = vmatmul.mubr.f32.gmra.mxu0 %v125
    %v948 = vpop.f32.mrf.mxu0
    %v949 = vadd.f32 0.0, %v948
    %v950 = vpop.f32.mrf.mxu0
    %951 = vdwg.mxu0
    %v952 = vadd.f32 %v863, %v934
    %v953 = vadd.f32 %v864, %v939
    %v954 = vadd.f32 %v865, %v944
    %v955 = vadd.f32 %v866, %v949
    %v956 = vtanh.pop %v952
    %v957 = vtanh.pop %v953
    %v958 = vtanh.pop %v954
    %v959 = vtanh.pop %v955
    %v960 = vmul.f32 %v223, %v956
    %v961 = vmul.f32 %v228, %v957
    %v962 = vmul.f32 %v233, %v958
    %v963 = vmul.f32 %v238, %v959
    %v964 = vadd.f32 %v960, %v961
    %v965 = vadd.f32 %v964, %v962
    %v966 = vadd.f32 %v965, %v963
    %v967 = vrot.slane %v966, 4
    %v968 = vadd.f32 %v966, %v967
    %v969 = vrot.slane %v968, 2
    %v970 = vadd.f32 %v968, %v969
    %v971 = vrot.slane %v970, 1
    %v972 = vadd.f32 %v970, %v971
    %973 = vst [vmem:[#allocation5 + $0x6] sm:$0x1] %v972
    %v974 = vld [vmem:[%s0 + $0x7] sm:$0x1]
    %v975 = vlaneseq
    %v976 = vshrl.u32 %v975, 7
    %v977 = vsub.s32 0, %v976
    %v978 = vrot.slane %v974, %v977
    %v979 = vmul.f32 %v65, %v978
    %v980 = vmul.f32 %v70, %v978
    %v981 = vmul.f32 %v75, %v978
    %v982 = vmul.f32 %v80, %v978
    %v983 = vadd.f32 %v979, %v93
    %v984 = vadd.f32 %v980, %v98
    %v985 = vadd.f32 %v981, %v103
    %v986 = vadd.f32 %v982, %v108
    %987 = vmatprep.subr.mxu0 0.0
    %988 = vmatpush1.msra.mxu0 0.0
    %989 = vmatprep.subr.mxu0 0.0
    %990 = vmatpush1.msra.mxu0 0.0
    %991 = vmatprep.subr.mxu0 0.0
    %992 = vmatpush1.msra.mxu0 0.0
    %993 = vmatprep.subr.mxu0 0.0
    %994 = vmatpush1.msra.mxu0 0.0
    %995 = vmatprep.subr.mxu0 0.0
    %996 = vmatpush1.msra.mxu0 0.0
    %997 = vmatprep.subr.mxu0 0.0
    %998 = vmatpush1.msra.mxu0 0.0
    %999 = vmatprep.subr.mxu0 0.0
    %1000 = vmatpush1.msra.mxu0 0.0
    %1001 = vmatprep.subr.mxu0 0.0
    %1002 = vmatpush1.msra.mxu0 0.0
    %1003 = vmatprep.subr.mxu0 0.0
    %1004 = vmatpush1.msra.mxu0 0.0
    %1005 = vmatprep.subr.mxu0 0.0
    %1006 = vmatpush1.msra.mxu0 0.0
    %1007 = vmatprep.subr.mxu0 0.0
    %1008 = vmatpush1.msra.mxu0 0.0
    %1009 = vmatprep.subr.mxu0 0.0
    %1010 = vmatpush1.msra.mxu0 0.0
    %1011 = vmatprep.subr.mxu0 0.0
    %1012 = vmatpush1.msra.mxu0 %v959
    %1013 = vmatprep.subr.mxu0 0.0
    %1014 = vmatpush1.msra.mxu0 %v958
    %1015 = vmatprep.subr.mxu0 0.0
    %1016 = vmatpush1.msra.mxu0 %v957
    %1017 = vmatprep.subr.mxu0 0.0
    %1018 = vmatpush1.msra.mxu0 %v956
    %1019 = vmatprep.subr.mxu0 0.0
    %1020 = vmatpush2.msra.mxu0 0.0
    %1021 = vmatprep.subr.mxu0 0.0
    %1022 = vmatpush2.msra.mxu0 0.0
    %1023 = vmatprep.subr.mxu0 0.0
    %1024 = vmatpush2.msra.mxu0 0.0
    %1025 = vmatprep.subr.mxu0 0.0
    %1026 = vmatpush2.msra.mxu0 0.0
    %1027 = vmatprep.subr.mxu0 0.0
    %1028 = vmatpush2.msra.mxu0 0.0
    %1029 = vmatprep.subr.mxu0 0.0
    %1030 = vmatpush2.msra.mxu0 0.0
    %1031 = vmatprep.subr.mxu0 0.0
    %1032 = vmatpush2.msra.mxu0 0.0
    %1033 = vmatprep.subr.mxu0 0.0
    %1034 = vmatpush2.msra.mxu0 0.0
    %1035 = vmatprep.subr.mxu0 0.0
    %1036 = vmatpush2.msra.mxu0 0.0
    %1037 = vmatprep.subr.mxu0 0.0
    %1038 = vmatpush2.msra.mxu0 0.0
    %1039 = vmatprep.subr.mxu0 0.0
    %1040 = vmatpush2.msra.mxu0 0.0
    %1041 = vmatprep.subr.mxu0 0.0
    %1042 = vmatpush2.msra.mxu0 0.0
    %1043 = vmatprep.subr.mxu0 0.0
    %1044 = vmatpush2.msra.mxu0 0.0
    %1045 = vmatprep.subr.mxu0 0.0
    %1046 = vmatpush2.msra.mxu0 0.0
    %1047 = vmatprep.subr.mxu0 0.0
    %1048 = vmatpush2.msra.mxu0 0.0
    %1049 = vmatprep.subr.mxu0 0.0
    %1050 = vmatpush2.msra.mxu0 0.0
    %1051 = vmatprep.mubr.f32.mxu0 0.0
    %1052 = vmatmul.mubr.f32.gmra.mxu0 %v116
    %v1053 = vpop.f32.mrf.mxu0
    %v1054 = vadd.f32 0.0, %v1053
    %v1055 = vpop.f32.mrf.mxu0
    %1056 = vmatprep.mubr.f32.mxu0 0.0
    %1057 = vmatmul.mubr.f32.gmra.mxu0 %v119
    %v1058 = vpop.f32.mrf.mxu0
    %v1059 = vadd.f32 0.0, %v1058
    %v1060 = vpop.f32.mrf.mxu0
    %1061 = vmatprep.mubr.f32.mxu0 0.0
    %1062 = vmatmul.mubr.f32.gmra.mxu0 %v122
    %v1063 = vpop.f32.mrf.mxu0
    %v1064 = vadd.f32 0.0, %v1063
    %v1065 = vpop.f32.mrf.mxu0
    %1066 = vmatprep.mubr.f32.mxu0 0.0
    %1067 = vmatmul.mubr.f32.gmra.mxu0 %v125
    %v1068 = vpop.f32.mrf.mxu0
    %v1069 = vadd.f32 0.0, %v1068
    %v1070 = vpop.f32.mrf.mxu0
    %1071 = vdwg.mxu0
    %v1072 = vadd.f32 %v983, %v1054
    %v1073 = vadd.f32 %v984, %v1059
    %v1074 = vadd.f32 %v985, %v1064
    %v1075 = vadd.f32 %v986, %v1069
    %v1076 = vtanh.pop %v1072
    %v1077 = vtanh.pop %v1073
    %v1078 = vtanh.pop %v1074
    %v1079 = vtanh.pop %v1075
    %v1080 = vmul.f32 %v223, %v1076
    %v1081 = vmul.f32 %v228, %v1077
    %v1082 = vmul.f32 %v233, %v1078
    %v1083 = vmul.f32 %v238, %v1079
    %v1084 = vadd.f32 %v1080, %v1081
    %v1085 = vadd.f32 %v1084, %v1082
    %v1086 = vadd.f32 %v1085, %v1083
    %v1087 = vrot.slane %v1086, 4
    %v1088 = vadd.f32 %v1086, %v1087
    %v1089 = vrot.slane %v1088, 2
    %v1090 = vadd.f32 %v1088, %v1089
    %v1091 = vrot.slane %v1090, 1
    %v1092 = vadd.f32 %v1090, %v1091
    %1093 = vst [vmem:[#allocation5 + $0x7] sm:$0x1] %v1092
    %1094 = vst [vmem:[#allocation6] sm:$0xff] %v1076
    %1095 = vst [vmem:[#allocation6 + $0x8] sm:$0xff] %v1077
    %1096 = vst [vmem:[#allocation6 + $0x10] sm:$0xff] %v1078
    %1097 = vst [vmem:[#allocation6 + $0x18] sm:$0xff] %v1079
    // Predicated region
    $region30: #{tpu_custom_call.1} parent=1 // pred_check
      _
    $region31: #{tpu_custom_call.1} parent=1 // pred_check_branch
      %1099 = sbr.rel (0) target = $region33
    $region32: #{tpu_custom_call.1} parent=1 // pred_region
      %s1101 = ssub.s32 128, 128
      %1102 = vsyncadd [#allocation4], %s1101
      %s1104 = sshll.u32 [#allocation5], 4
      %s1105 = int_to_ptr.vmem [resolvable:$true] %s1104
      %1107 = dma.vmem_to_hbm [thread:$0]  %s1105, 128, %s6, [#allocation4]
    $region33: #{tpu_custom_call.1} parent=1 // pred_fallthru
      _
    // Predicated region
    $region34: #{tpu_custom_call.1} parent=1 // pred_check
      _
    $region35: #{tpu_custom_call.1} parent=1 // pred_check_branch
      %1109 = sbr.rel (0) target = $region37
    $region36: #{tpu_custom_call.1} parent=1 // pred_region
      %s1111 = ssub.s32 512, 512
      %1112 = vsyncadd [#allocation7], %s1111
      %s1113 = sshll.u32 [#allocation6], 4
      %s1114 = int_to_ptr.vmem [resolvable:$true] %s1113
      %1119 = dma.vmem_to_hbm [thread:$0]  %s1114, 512, %s7, [#allocation7], 128, 128, 8
    $region37: #{tpu_custom_call.1} parent=1 // pred_fallthru
      _
    // Predicated region
    $region38: #{tpu_custom_call.1} parent=1 // pred_check
      _
    $region39: #{tpu_custom_call.1} parent=1 // pred_check_branch
      %1121 = sbr.rel (0) target = $region41
    $region40: #{tpu_custom_call.1} parent=1 // pred_region
      %1122 = dma.done [#allocation4], 128
    $region41: #{tpu_custom_call.1} parent=1 // pred_fallthru
      _
    // Predicated region
    $region42: #{tpu_custom_call.1} parent=1 // pred_check
      _
    $region43: #{tpu_custom_call.1} parent=1 // pred_check_branch
      %1124 = sbr.rel (0) target = $region45
    $region44: #{tpu_custom_call.1} parent=1 // pred_region
      %1125 = dma.done [#allocation7], 512
    $region45: #{tpu_custom_call.1} parent=1 // pred_fallthru
      _
    %1126 = vsyncpa [#allocation3], 1
    %1127 = vsyncpa [#allocation4], 1
    %1128 = vsyncpa [#allocation7], 1

</llo_original>
